<compile_context>
chip_gen: v7x
topology: tpu7x:2x2x1
jax: 0.10.0
libtpu: 0.0.40
codegen_flags: <defaults>
</compile_context>

<pallas_src>
import functools

import jax
import jax.numpy as jnp
from jax.experimental import pallas as pl
from jax.experimental.pallas import tpu as pltpu


def _round_up(n, m):
    return (n + m - 1) // m * m


def _batch_disc_kernel(x_ref, t_ref, o_ref, *, B, D, Kp):
    x = x_ref[...].astype(jnp.float32)                        # (B, F)
    T = t_ref[...]                                            # (F, D*Kp) f32, d-major

    # Single MXU op: M[b, d*Kp + k] == (x @ T_orig)[b, k*D + d]  (padded k -> 0).
    M = jnp.dot(x, T, preferred_element_type=jnp.float32)     # (B, D*Kp)

    # Grouped pairwise L1: each d picks a static, lane-aligned 128-wide slice
    # (pure vreg selection), the reduction over d is (D-1) VPU adds per vreg.
    # Sign is folded in: accumulate -|M[a]-M[b]| so exp needs no extra negate.
    neg_l1 = jnp.zeros((B, B, Kp), jnp.float32)
    for d in range(D):
        Md = M[:, d * Kp:(d + 1) * Kp]                        # (B, Kp)
        neg_l1 = neg_l1 - jnp.abs(Md[:, None, :] - Md[None, :, :])

    # exp on the EUP, then reduce over the "other sample" axis.
    out = jnp.exp(neg_l1).sum(axis=1)                         # (B, Kp)
    o_ref[...] = out.astype(o_ref.dtype)


def batch_discrimination(x, T, *, num_kernels, kernel_dim):
    B, F = x.shape
    K, D = num_kernels, kernel_dim
    KD = K * D
    assert T.shape == (F, KD)

    Kp = _round_up(K, 128)     # 100 -> 128 (lane dim of every d-group)

    # Column-permute T into d-major group layout, zero-padding K to Kp so every
    # group occupies a full, lane-dense 128-wide slab:
    #   T_perm[:, d*Kp + k] = T[:, k*D + d]   for k < K, else 0.
    # Padded k columns give L1 == 0 -> exp(0) == 1 -> out[:, K:] == B; those
    # columns are sliced off below, so padding never leaks into results.
    T_dm = jnp.transpose(T.astype(jnp.float32).reshape(F, K, D), (0, 2, 1))  # (F, D, K)
    T_perm = jnp.pad(T_dm, ((0, 0), (0, 0), (0, Kp - K))).reshape(F, D * Kp)

    cost = pl.CostEstimate(
        flops=2 * B * F * D * Kp + 3 * B * B * D * Kp + 2 * B * B * Kp,
        transcendentals=B * B * Kp,
        bytes_accessed=(x.size * x.dtype.itemsize
                        + T_perm.size * 4 + B * Kp * 4),
    )

    kernel = functools.partial(_batch_disc_kernel, B=B, D=D, Kp=Kp)
    out = pl.pallas_call(
        kernel,
        out_shape=jax.ShapeDtypeStruct((B, Kp), x.dtype),
        in_specs=[
            pl.BlockSpec(memory_space=pltpu.MemorySpace.VMEM),
            pl.BlockSpec(memory_space=pltpu.MemorySpace.VMEM),
        ],
        out_specs=pl.BlockSpec(memory_space=pltpu.MemorySpace.VMEM),
        cost_estimate=cost,
    )(x, T_perm)

    # torch.cat([x, output], dim=1): done in the wrapper so the Pallas store is
    # a single lane-dense (B, 128) vst and x never round-trips through VMEM.
    return jnp.concatenate([x, out[:, :K]], axis=1)


def batch_discrimination_ref(x, T, *, num_kernels, kernel_dim):
    """Pure-JAX reference mirroring the PyTorch forward exactly."""
    B = x.shape[0]
    M = (x @ T).reshape(B, num_kernels, kernel_dim)
    M1 = M[None, :, :, :]
    M2 = M[:, None, :, :]
    L1 = jnp.abs(M1 - M2).sum(axis=3)          # (B, B, K)
    out = jnp.exp(-L1).sum(axis=1)             # (B, K)
    return jnp.concatenate([x, out], axis=1)


if __name__ == "__main__":
    # Module config (defaults from BatchDiscrimination.__init__)
    batch_size = 8
    in_features = 32
    num_kernels = 100
    kernel_dim = 5

    key = jax.random.PRNGKey(0)
    kx, kt = jax.random.split(key)
    x = jax.random.normal(kx, (batch_size, in_features), dtype=jnp.float32)
    # nn.Parameter(torch.randn(in_features, num_kernels * kernel_dim))
    T = jax.random.normal(kt, (in_features, num_kernels * kernel_dim),
                          dtype=jnp.float32)

    y = batch_discrimination(x, T, num_kernels=num_kernels,
                             kernel_dim=kernel_dim)
    y = jax.block_until_ready(y)

    y_ref = batch_discrimination_ref(x, T, num_kernels=num_kernels,
                                     kernel_dim=kernel_dim)
    assert y.shape == (batch_size, in_features + num_kernels)
    assert jnp.allclose(y, y_ref, atol=1e-4, rtol=1e-4), "mismatch vs reference"

    print("KERNEL_OK")
</pallas_src>

<mosaic_0001>
module attributes {stable_mosaic.version = 11 : i64} {
  func.func @_batch_disc_kernel(%arg0: memref<8x32xf32, #tpu.memory_space<vmem>>, %arg1: memref<32x640xf32, #tpu.memory_space<vmem>>, %arg2: memref<8x128xf32, #tpu.memory_space<vmem>>) attributes {dimension_semantics = [], scalar_prefetch = 0 : i64, scratch_operands = 0 : i64, tpu.core_type = #tpu.core_type<tc>} {
    %c0 = arith.constant 0 : index
    %c0_0 = arith.constant 0 : index
    %0 = vector.load %arg0[%c0, %c0_0] : memref<8x32xf32, #tpu.memory_space<vmem>>, vector<8x32xf32>
    %c0_1 = arith.constant 0 : index
    %c0_2 = arith.constant 0 : index
    %1 = vector.load %arg1[%c0_1, %c0_2] : memref<32x640xf32, #tpu.memory_space<vmem>>, vector<32x640xf32>
    %cst = arith.constant dense<0.000000e+00> : vector<8x640xf32>
    %2 = tpu.matmul %0, %1, %cst {dimension_numbers = #tpu.dot_dimension_numbers<[1], [0], [0], [1], [0, 0, 1, 1], [], []>} : vector<8x32xf32>, vector<32x640xf32>, vector<8x640xf32> -> vector<8x640xf32>
    %cst_3 = arith.constant 0.000000e+00 : f32
    %3 = vector.broadcast %cst_3 : f32 to vector<8x8x128xf32>
    %4 = vector.extract_strided_slice %2 {offsets = [0, 0], sizes = [8, 128], strides = [1, 1]} : vector<8x640xf32> to vector<8x128xf32>
    %5 = vector.shape_cast %4 : vector<8x128xf32> to vector<8x1x128xf32>
    %6 = vector.shape_cast %4 : vector<8x128xf32> to vector<1x8x128xf32>
    %7 = vector.broadcast %5 : vector<8x1x128xf32> to vector<8x8x128xf32>
    %8 = vector.broadcast %6 : vector<1x8x128xf32> to vector<8x8x128xf32>
    %9 = arith.subf %7, %8 : vector<8x8x128xf32>
    %10 = math.absf %9 : vector<8x8x128xf32>
    %11 = arith.subf %3, %10 : vector<8x8x128xf32>
    %12 = vector.extract_strided_slice %2 {offsets = [0, 128], sizes = [8, 128], strides = [1, 1]} : vector<8x640xf32> to vector<8x128xf32>
    %13 = vector.shape_cast %12 : vector<8x128xf32> to vector<8x1x128xf32>
    %14 = vector.shape_cast %12 : vector<8x128xf32> to vector<1x8x128xf32>
    %15 = vector.broadcast %13 : vector<8x1x128xf32> to vector<8x8x128xf32>
    %16 = vector.broadcast %14 : vector<1x8x128xf32> to vector<8x8x128xf32>
    %17 = arith.subf %15, %16 : vector<8x8x128xf32>
    %18 = math.absf %17 : vector<8x8x128xf32>
    %19 = arith.subf %11, %18 : vector<8x8x128xf32>
    %20 = vector.extract_strided_slice %2 {offsets = [0, 256], sizes = [8, 128], strides = [1, 1]} : vector<8x640xf32> to vector<8x128xf32>
    %21 = vector.shape_cast %20 : vector<8x128xf32> to vector<8x1x128xf32>
    %22 = vector.shape_cast %20 : vector<8x128xf32> to vector<1x8x128xf32>
    %23 = vector.broadcast %21 : vector<8x1x128xf32> to vector<8x8x128xf32>
    %24 = vector.broadcast %22 : vector<1x8x128xf32> to vector<8x8x128xf32>
    %25 = arith.subf %23, %24 : vector<8x8x128xf32>
    %26 = math.absf %25 : vector<8x8x128xf32>
    %27 = arith.subf %19, %26 : vector<8x8x128xf32>
    %28 = vector.extract_strided_slice %2 {offsets = [0, 384], sizes = [8, 128], strides = [1, 1]} : vector<8x640xf32> to vector<8x128xf32>
    %29 = vector.shape_cast %28 : vector<8x128xf32> to vector<8x1x128xf32>
    %30 = vector.shape_cast %28 : vector<8x128xf32> to vector<1x8x128xf32>
    %31 = vector.broadcast %29 : vector<8x1x128xf32> to vector<8x8x128xf32>
    %32 = vector.broadcast %30 : vector<1x8x128xf32> to vector<8x8x128xf32>
    %33 = arith.subf %31, %32 : vector<8x8x128xf32>
    %34 = math.absf %33 : vector<8x8x128xf32>
    %35 = arith.subf %27, %34 : vector<8x8x128xf32>
    %36 = vector.extract_strided_slice %2 {offsets = [0, 512], sizes = [8, 128], strides = [1, 1]} : vector<8x640xf32> to vector<8x128xf32>
    %37 = vector.shape_cast %36 : vector<8x128xf32> to vector<8x1x128xf32>
    %38 = vector.shape_cast %36 : vector<8x128xf32> to vector<1x8x128xf32>
    %39 = vector.broadcast %37 : vector<8x1x128xf32> to vector<8x8x128xf32>
    %40 = vector.broadcast %38 : vector<1x8x128xf32> to vector<8x8x128xf32>
    %41 = arith.subf %39, %40 : vector<8x8x128xf32>
    %42 = math.absf %41 : vector<8x8x128xf32>
    %43 = arith.subf %35, %42 : vector<8x8x128xf32>
    %44 = math.exp %43 : vector<8x8x128xf32>
    %cst_4 = arith.constant dense<0.000000e+00> : vector<8x128xf32>
    %45 = vector.multi_reduction <add>, %44, %cst_4 [1] : vector<8x8x128xf32> to vector<8x128xf32>
    %c0_5 = arith.constant 0 : index
    %c0_6 = arith.constant 0 : index
    %46 = vector.load %arg2[%c0_5, %c0_6] : memref<8x128xf32, #tpu.memory_space<vmem>>, vector<8x128xf32>
    tpu.vector_store %arg2[%c0_5, %c0_6], %45 {strides = array<i32>} : memref<8x128xf32, #tpu.memory_space<vmem>>, vector<8x128xf32>,
    return
  }
}

</mosaic_0001>

<llo_original>
// kernel: tpu_custom_call.1
$region0: #{tpu_custom_call.1}
  #allocation0 [shape = 'u32[]', space=smem, size = 0x4, offset = 0x4, fixed_abs, tag = 'smem constant byte address 0x4 - core index']
  #allocation1 [shape = 'u32[144,128]{1,0:T(1,128)}', space=vmem, size = 0x12000, scoped, tag = 'internal scratch']
  %s0 = inlined_call_operand.hbm [shape: f32[8,32], index: 0, kind: input, shape index: {}]
  %s1 = inlined_call_operand.hbm [shape: f32[32,640], index: 1, kind: input, shape index: {}]
  %s2 = inlined_call_operand.hbm [shape: f32[8,128], index: 2, kind: output, shape index: {}]
  %s3 = sld [smem:[#allocation0]]
  $region26: #{tpu_custom_call.1} parent=0
    _
  %s5 = ssub.s32 1, %s3
  %s6 = scalar_select 0, %s5, %s3
  $region1: #{tpu_custom_call.1} parent=0
    #allocation2 [shape = 'u8[4096]{0}', space=vmem, size = 0x1000, scoped, tag = 'input window, operand 0, single buffered']
    #allocation3 [shape = 's32[1]{0}', space=sflag, size = 0x4, scoped, tag = 'scoped memory for tpu_custom_call.1']
    #allocation4 [shape = 's32[1]{0}', space=sflag, size = 0x4, scoped, tag = 'scoped memory for tpu_custom_call.1']
    #allocation5 [shape = 'u8[81920]{0}', space=vmem, size = 0x14000, scoped, tag = 'input window, operand 1, single buffered']
    #allocation6 [shape = 's32[1]{0}', space=sflag, size = 0x4, scoped, tag = 'scoped memory for tpu_custom_call.1']
    #allocation7 [shape = 'u8[4096]{0}', space=vmem, size = 0x1000, scoped, tag = 'output window, operand 0, single buffered']
    %7 = vsyncpa [#allocation3], 0
    %8 = vsyncpa [#allocation6], 0
    %9 = vsyncpa [#allocation4], 0
    // Predicated region
    $region2: #{tpu_custom_call.1} parent=1 // pred_check
      _
    $region3: #{tpu_custom_call.1} parent=1 // pred_check_branch
      %11 = sbr.rel (0) target = $region5
    $region4: #{tpu_custom_call.1} parent=1 // pred_region
      %s13 = ssub.s32 128, 128
      %14 = vsyncadd [#allocation3], %s13
      %s16 = sshll.u32 [#allocation2], 4
      %s17 = int_to_ptr.vmem [resolvable:$true] %s16
      %19 = dma.hbm_to_vmem [thread:$0]  %s0, 128, %s17, [#allocation3]
    $region5: #{tpu_custom_call.1} parent=1 // pred_fallthru
      _
    // Predicated region
    $region6: #{tpu_custom_call.1} parent=1 // pred_check
      _
    $region7: #{tpu_custom_call.1} parent=1 // pred_check_branch
      %21 = sbr.rel (0) target = $region9
    $region8: #{tpu_custom_call.1} parent=1 // pred_region
      %s23 = ssub.s32 2560, 2560
      %24 = vsyncadd [#allocation6], %s23
      %s25 = sshll.u32 [#allocation5], 4
      %s26 = int_to_ptr.vmem [resolvable:$true] %s25
      %31 = dma.hbm_to_vmem [thread:$0]  %s1, 2560, %s26, [#allocation6], 640, 640, 40
    $region9: #{tpu_custom_call.1} parent=1 // pred_fallthru
      _
    // Predicated region
    $region10: #{tpu_custom_call.1} parent=1 // pred_check
      _
    $region11: #{tpu_custom_call.1} parent=1 // pred_check_branch
      %33 = sbr.rel (0) target = $region13
    $region12: #{tpu_custom_call.1} parent=1 // pred_region
      %34 = dma.done [#allocation3], 128
    $region13: #{tpu_custom_call.1} parent=1 // pred_fallthru
      _
    // Predicated region
    $region14: #{tpu_custom_call.1} parent=1 // pred_check
      _
    $region15: #{tpu_custom_call.1} parent=1 // pred_check_branch
      %36 = sbr.rel (0) target = $region17
    $region16: #{tpu_custom_call.1} parent=1 // pred_region
      %37 = dma.done [#allocation6], 2560
    $region17: #{tpu_custom_call.1} parent=1 // pred_fallthru
      _
    %v38 = vld [vmem:[#allocation2] sm:$0xff]
    %v39 = vld [vmem:[#allocation5] sm:$0xff]
    %v40 = vld [vmem:[#allocation5 + $0x8] sm:$0xff]
    %v41 = vld [vmem:[#allocation5 + $0x10] sm:$0xff]
    %v42 = vld [vmem:[#allocation5 + $0x18] sm:$0xff]
    %v43 = vld [vmem:[#allocation5 + $0x20] sm:$0xff]
    %v44 = vld [vmem:[#allocation5 + $0x28] sm:$0xff]
    %v45 = vld [vmem:[#allocation5 + $0x30] sm:$0xff]
    %v46 = vld [vmem:[#allocation5 + $0x38] sm:$0xff]
    %v47 = vld [vmem:[#allocation5 + $0x40] sm:$0xff]
    %v48 = vld [vmem:[#allocation5 + $0x48] sm:$0xff]
    %v49 = vld [vmem:[#allocation5 + $0x50] sm:$0xff]
    %v50 = vld [vmem:[#allocation5 + $0x58] sm:$0xff]
    %v51 = vld [vmem:[#allocation5 + $0x60] sm:$0xff]
    %v52 = vld [vmem:[#allocation5 + $0x68] sm:$0xff]
    %v53 = vld [vmem:[#allocation5 + $0x70] sm:$0xff]
    %v54 = vld [vmem:[#allocation5 + $0x78] sm:$0xff]
    %v55 = vld [vmem:[#allocation5 + $0x80] sm:$0xff]
    %v56 = vld [vmem:[#allocation5 + $0x88] sm:$0xff]
    %v57 = vld [vmem:[#allocation5 + $0x90] sm:$0xff]
    %v58 = vld [vmem:[#allocation5 + $0x98] sm:$0xff]
    %vm59 = vcmask 261120
    %v61 = vsel %vm59, %v38, 0
    %63 = vmatprep.subr.mxu0 %v40
    %64 = vmatpush1.msra.mxu0 %v39
    %65 = vmatprep.subr.mxu0 %v45
    %66 = vmatpush1.msra.mxu0 %v44
    %67 = vmatprep.subr.mxu0 %v50
    %68 = vmatpush1.msra.mxu0 %v49
    %69 = vmatprep.subr.mxu0 %v55
    %70 = vmatpush1.msra.mxu0 %v54
    %71 = vmatprep.subr.mxu0 0.0
    %72 = vmatpush1.msra.mxu0 0.0
    %73 = vmatprep.subr.mxu0 0.0
    %74 = vmatpush1.msra.mxu0 0.0
    %75 = vmatprep.subr.mxu0 0.0
    %76 = vmatpush1.msra.mxu0 0.0
    %77 = vmatprep.subr.mxu0 0.0
    %78 = vmatpush1.msra.mxu0 0.0
    %79 = vmatprep.subr.mxu0 0.0
    %80 = vmatpush1.msra.mxu0 0.0
    %81 = vmatprep.subr.mxu0 0.0
    %82 = vmatpush1.msra.mxu0 0.0
    %83 = vmatprep.subr.mxu0 0.0
    %84 = vmatpush1.msra.mxu0 0.0
    %85 = vmatprep.subr.mxu0 0.0
    %86 = vmatpush1.msra.mxu0 0.0
    %87 = vmatprep.subr.mxu0 0.0
    %88 = vmatpush1.msra.mxu0 0.0
    %89 = vmatprep.subr.mxu0 0.0
    %90 = vmatpush1.msra.mxu0 0.0
    %91 = vmatprep.subr.mxu0 0.0
    %92 = vmatpush1.msra.mxu0 0.0
    %93 = vmatprep.subr.mxu0 0.0
    %94 = vmatpush1.msra.mxu0 0.0
    %95 = vmatprep.subr.mxu0 0.0
    %96 = vmatpush1.msra.mxu0 0.0
    %97 = vmatprep.subr.mxu0 0.0
    %98 = vmatpush1.msra.mxu0 0.0
    %99 = vmatprep.subr.mxu0 0.0
    %100 = vmatpush1.msra.mxu0 0.0
    %101 = vmatprep.subr.mxu0 0.0
    %102 = vmatpush1.msra.mxu0 0.0
    %103 = vmatprep.subr.mxu0 0.0
    %104 = vmatpush1.msra.mxu0 0.0
    %105 = vmatprep.subr.mxu0 0.0
    %106 = vmatpush1.msra.mxu0 0.0
    %107 = vmatprep.subr.mxu0 0.0
    %108 = vmatpush1.msra.mxu0 0.0
    %109 = vmatprep.subr.mxu0 0.0
    %110 = vmatpush1.msra.mxu0 0.0
    %111 = vmatprep.subr.mxu0 0.0
    %112 = vmatpush1.msra.mxu0 0.0
    %113 = vmatprep.subr.mxu0 0.0
    %114 = vmatpush1.msra.mxu0 0.0
    %115 = vmatprep.subr.mxu0 0.0
    %116 = vmatpush1.msra.mxu0 0.0
    %117 = vmatprep.subr.mxu0 0.0
    %118 = vmatpush1.msra.mxu0 0.0
    %119 = vmatprep.subr.mxu0 0.0
    %120 = vmatpush1.msra.mxu0 0.0
    %121 = vmatprep.subr.mxu0 0.0
    %122 = vmatpush1.msra.mxu0 0.0
    %123 = vmatprep.subr.mxu0 0.0
    %124 = vmatpush1.msra.mxu0 0.0
    %125 = vmatprep.subr.mxu0 0.0
    %126 = vmatpush1.msra.mxu0 0.0
    %127 = vmatprep.mubr.f32.mxu0 0.0
    %128 = vmatmul.mubr.f32.gmra.mrb[0].mxu0 %v61
    %v129 = vpop.f32.mrb[0].mxu0
    %v130 = vadd.f32 0.0, %v129
    %v131 = vpop.f32.mrb[0].mxu0
    %v132 = vadd.f32 0.0, %v131
    %133 = vdwg.mxu0
    %134 = vmatprep.subr.mxu0 %v42
    %135 = vmatpush1.msra.mxu0 %v41
    %136 = vmatprep.subr.mxu0 %v47
    %137 = vmatpush1.msra.mxu0 %v46
    %138 = vmatprep.subr.mxu0 %v52
    %139 = vmatpush1.msra.mxu0 %v51
    %140 = vmatprep.subr.mxu0 %v57
    %141 = vmatpush1.msra.mxu0 %v56
    %142 = vmatprep.subr.mxu0 0.0
    %143 = vmatpush1.msra.mxu0 0.0
    %144 = vmatprep.subr.mxu0 0.0
    %145 = vmatpush1.msra.mxu0 0.0
    %146 = vmatprep.subr.mxu0 0.0
    %147 = vmatpush1.msra.mxu0 0.0
    %148 = vmatprep.subr.mxu0 0.0
    %149 = vmatpush1.msra.mxu0 0.0
    %150 = vmatprep.subr.mxu0 0.0
    %151 = vmatpush1.msra.mxu0 0.0
    %152 = vmatprep.subr.mxu0 0.0
    %153 = vmatpush1.msra.mxu0 0.0
    %154 = vmatprep.subr.mxu0 0.0
    %155 = vmatpush1.msra.mxu0 0.0
    %156 = vmatprep.subr.mxu0 0.0
    %157 = vmatpush1.msra.mxu0 0.0
    %158 = vmatprep.subr.mxu0 0.0
    %159 = vmatpush1.msra.mxu0 0.0
    %160 = vmatprep.subr.mxu0 0.0
    %161 = vmatpush1.msra.mxu0 0.0
    %162 = vmatprep.subr.mxu0 0.0
    %163 = vmatpush1.msra.mxu0 0.0
    %164 = vmatprep.subr.mxu0 0.0
    %165 = vmatpush1.msra.mxu0 0.0
    %166 = vmatprep.subr.mxu0 0.0
    %167 = vmatpush1.msra.mxu0 0.0
    %168 = vmatprep.subr.mxu0 0.0
    %169 = vmatpush1.msra.mxu0 0.0
    %170 = vmatprep.subr.mxu0 0.0
    %171 = vmatpush1.msra.mxu0 0.0
    %172 = vmatprep.subr.mxu0 0.0
    %173 = vmatpush1.msra.mxu0 0.0
    %174 = vmatprep.subr.mxu0 0.0
    %175 = vmatpush1.msra.mxu0 0.0
    %176 = vmatprep.subr.mxu0 0.0
    %177 = vmatpush1.msra.mxu0 0.0
    %178 = vmatprep.subr.mxu0 0.0
    %179 = vmatpush1.msra.mxu0 0.0
    %180 = vmatprep.subr.mxu0 0.0
    %181 = vmatpush1.msra.mxu0 0.0
    %182 = vmatprep.subr.mxu0 0.0
    %183 = vmatpush1.msra.mxu0 0.0
    %184 = vmatprep.subr.mxu0 0.0
    %185 = vmatpush1.msra.mxu0 0.0
    %186 = vmatprep.subr.mxu0 0.0
    %187 = vmatpush1.msra.mxu0 0.0
    %188 = vmatprep.subr.mxu0 0.0
    %189 = vmatpush1.msra.mxu0 0.0
    %190 = vmatprep.subr.mxu0 0.0
    %191 = vmatpush1.msra.mxu0 0.0
    %192 = vmatprep.subr.mxu0 0.0
    %193 = vmatpush1.msra.mxu0 0.0
    %194 = vmatprep.subr.mxu0 0.0
    %195 = vmatpush1.msra.mxu0 0.0
    %196 = vmatprep.subr.mxu0 0.0
    %197 = vmatpush1.msra.mxu0 0.0
    %198 = vmatprep.mubr.f32.mxu0 0.0
    %199 = vmatmul.mubr.f32.gmra.mrb[0].mxu0 %v61
    %v200 = vpop.f32.mrb[0].mxu0
    %v201 = vadd.f32 0.0, %v200
    %v202 = vpop.f32.mrb[0].mxu0
    %v203 = vadd.f32 0.0, %v202
    %204 = vdwg.mxu0
    %205 = vmatprep.subr.mxu0 0.0
    %206 = vmatpush1.msra.mxu0 %v43
    %207 = vmatprep.subr.mxu0 0.0
    %208 = vmatpush1.msra.mxu0 %v48
    %209 = vmatprep.subr.mxu0 0.0
    %210 = vmatpush1.msra.mxu0 %v53
    %211 = vmatprep.subr.mxu0 0.0
    %212 = vmatpush1.msra.mxu0 %v58
    %213 = vmatprep.subr.mxu0 0.0
    %214 = vmatpush1.msra.mxu0 0.0
    %215 = vmatprep.subr.mxu0 0.0
    %216 = vmatpush1.msra.mxu0 0.0
    %217 = vmatprep.subr.mxu0 0.0
    %218 = vmatpush1.msra.mxu0 0.0
    %219 = vmatprep.subr.mxu0 0.0
    %220 = vmatpush1.msra.mxu0 0.0
    %221 = vmatprep.subr.mxu0 0.0
    %222 = vmatpush1.msra.mxu0 0.0
    %223 = vmatprep.subr.mxu0 0.0
    %224 = vmatpush1.msra.mxu0 0.0
    %225 = vmatprep.subr.mxu0 0.0
    %226 = vmatpush1.msra.mxu0 0.0
    %227 = vmatprep.subr.mxu0 0.0
    %228 = vmatpush1.msra.mxu0 0.0
    %229 = vmatprep.subr.mxu0 0.0
    %230 = vmatpush1.msra.mxu0 0.0
    %231 = vmatprep.subr.mxu0 0.0
    %232 = vmatpush1.msra.mxu0 0.0
    %233 = vmatprep.subr.mxu0 0.0
    %234 = vmatpush1.msra.mxu0 0.0
    %235 = vmatprep.subr.mxu0 0.0
    %236 = vmatpush1.msra.mxu0 0.0
    %237 = vmatprep.subr.mxu0 0.0
    %238 = vmatpush1.msra.mxu0 0.0
    %239 = vmatprep.subr.mxu0 0.0
    %240 = vmatpush1.msra.mxu0 0.0
    %241 = vmatprep.subr.mxu0 0.0
    %242 = vmatpush1.msra.mxu0 0.0
    %243 = vmatprep.subr.mxu0 0.0
    %244 = vmatpush1.msra.mxu0 0.0
    %245 = vmatprep.subr.mxu0 0.0
    %246 = vmatpush1.msra.mxu0 0.0
    %247 = vmatprep.subr.mxu0 0.0
    %248 = vmatpush1.msra.mxu0 0.0
    %249 = vmatprep.subr.mxu0 0.0
    %250 = vmatpush1.msra.mxu0 0.0
    %251 = vmatprep.subr.mxu0 0.0
    %252 = vmatpush1.msra.mxu0 0.0
    %253 = vmatprep.subr.mxu0 0.0
    %254 = vmatpush1.msra.mxu0 0.0
    %255 = vmatprep.subr.mxu0 0.0
    %256 = vmatpush1.msra.mxu0 0.0
    %257 = vmatprep.subr.mxu0 0.0
    %258 = vmatpush1.msra.mxu0 0.0
    %259 = vmatprep.subr.mxu0 0.0
    %260 = vmatpush1.msra.mxu0 0.0
    %261 = vmatprep.subr.mxu0 0.0
    %262 = vmatpush1.msra.mxu0 0.0
    %263 = vmatprep.subr.mxu0 0.0
    %264 = vmatpush1.msra.mxu0 0.0
    %265 = vmatprep.subr.mxu0 0.0
    %266 = vmatpush1.msra.mxu0 0.0
    %267 = vmatprep.subr.mxu0 0.0
    %268 = vmatpush1.msra.mxu0 0.0
    %269 = vmatprep.mubr.f32.mxu0 0.0
    %270 = vmatmul.mubr.f32.gmra.mrb[0].mxu0 %v61
    %v271 = vpop.f32.mrb[0].mxu0
    %v272 = vadd.f32 0.0, %v271
    %v273 = vpop.f32.mrb[0].mxu0
    %274 = vdwg.mxu0
    %v276 = vcombine.high %v130, %v130
    %v278 = vunpack.c.l.s4 1966171168
    %v279 = vunpack.c.0.s8 %v278
    %v280 = vlaneseq
    %v281 = vshrl.u32 %v280, 7
    %v282 = vsub.s32 %v279, %v281
    %v283 = vrot.slane %v130, %v282
    %v285 = vunpack.c.l.s4 1966171168
    %v286 = vunpack.c.0.s8 %v285
    %v287 = vlaneseq
    %v288 = vshrl.u32 %v287, 7
    %v289 = vsub.s32 %v286, %v288
    %v290 = vrot.slane %v276, %v289
    %v291 = vcombine.high %v283, %v283
    %v292 = vcombine.high %v290, %v290
    %v294 = vunpack.c.l.s4 1966171168
    %v295 = vunpack.c.0.s8 %v294
    %v296 = vlaneseq
    %v297 = vshrl.u32 %v296, 7
    %v298 = vsub.s32 %v295, %v297
    %v299 = vrot.slane %v283, %v298
    %v301 = vunpack.c.l.s4 1966171168
    %v302 = vunpack.c.0.s8 %v301
    %v303 = vlaneseq
    %v304 = vshrl.u32 %v303, 7
    %v305 = vsub.s32 %v302, %v304
    %v306 = vrot.slane %v290, %v305
    %v308 = vunpack.c.l.s4 1966171168
    %v309 = vunpack.c.0.s8 %v308
    %v310 = vlaneseq
    %v311 = vshrl.u32 %v310, 7
    %v312 = vsub.s32 %v309, %v311
    %v313 = vrot.slane %v291, %v312
    %v315 = vunpack.c.l.s4 1966171168
    %v316 = vunpack.c.0.s8 %v315
    %v317 = vlaneseq
    %v318 = vshrl.u32 %v317, 7
    %v319 = vsub.s32 %v316, %v318
    %v320 = vrot.slane %v292, %v319
    %v321 = vcombine.high %v299, %v299
    %v322 = vcombine.high %v306, %v306
    %v323 = vcombine.high %v313, %v313
    %v324 = vcombine.high %v320, %v320
    %v325 = vlaneseq
    %v326 = vshrl.u32 %v325, 7
    %v327 = vsub.s32 0, %v326
    %v328 = vrot.slane %v299, %v327
    %v329 = vlaneseq
    %v330 = vshrl.u32 %v329, 7
    %v331 = vsub.s32 0, %v330
    %v332 = vrot.slane %v313, %v331
    %v333 = vlaneseq
    %v334 = vshrl.u32 %v333, 7
    %v335 = vsub.s32 0, %v334
    %v336 = vrot.slane %v321, %v335
    %v337 = vlaneseq
    %v338 = vshrl.u32 %v337, 7
    %v339 = vsub.s32 0, %v338
    %v340 = vrot.slane %v323, %v339
    %v341 = vlaneseq
    %v342 = vshrl.u32 %v341, 7
    %v343 = vsub.s32 0, %v342
    %v344 = vrot.slane %v306, %v343
    %v345 = vlaneseq
    %v346 = vshrl.u32 %v345, 7
    %v347 = vsub.s32 0, %v346
    %v348 = vrot.slane %v320, %v347
    %v349 = vlaneseq
    %v350 = vshrl.u32 %v349, 7
    %v351 = vsub.s32 0, %v350
    %v352 = vrot.slane %v322, %v351
    %v353 = vlaneseq
    %v354 = vshrl.u32 %v353, 7
    %v355 = vsub.s32 0, %v354
    %v356 = vrot.slane %v324, %v355
    %v365 = vsub.f32 %v328, %v130
    %v366 = vsub.f32 %v332, %v130
    %v367 = vsub.f32 %v336, %v130
    %v368 = vsub.f32 %v340, %v130
    %v369 = vsub.f32 %v344, %v130
    %v370 = vsub.f32 %v348, %v130
    %v371 = vsub.f32 %v352, %v130
    %v372 = vsub.f32 %v356, %v130
    %v373 = vand.u32 2147483647, %v365
    %v374 = vand.u32 2147483647, %v366
    %v375 = vand.u32 2147483647, %v367
    %v376 = vand.u32 2147483647, %v368
    %v377 = vand.u32 2147483647, %v369
    %v378 = vand.u32 2147483647, %v370
    %v379 = vand.u32 2147483647, %v371
    %v380 = vand.u32 2147483647, %v372
    %v381 = vsub.f32 0.0, %v373
    %v382 = vsub.f32 0.0, %v374
    %v383 = vsub.f32 0.0, %v375
    %v384 = vsub.f32 0.0, %v376
    %v385 = vsub.f32 0.0, %v377
    %v386 = vsub.f32 0.0, %v378
    %v387 = vsub.f32 0.0, %v379
    %v388 = vsub.f32 0.0, %v380
    %v390 = vcombine.high %v132, %v132
    %v392 = vunpack.c.l.s4 1966171168
    %v393 = vunpack.c.0.s8 %v392
    %v394 = vlaneseq
    %v395 = vshrl.u32 %v394, 7
    %v396 = vsub.s32 %v393, %v395
    %v397 = vrot.slane %v132, %v396
    %v399 = vunpack.c.l.s4 1966171168
    %v400 = vunpack.c.0.s8 %v399
    %v401 = vlaneseq
    %v402 = vshrl.u32 %v401, 7
    %v403 = vsub.s32 %v400, %v402
    %v404 = vrot.slane %v390, %v403
    %v405 = vcombine.high %v397, %v397
    %v406 = vcombine.high %v404, %v404
    %v408 = vunpack.c.l.s4 1966171168
    %v409 = vunpack.c.0.s8 %v408
    %v410 = vlaneseq
    %v411 = vshrl.u32 %v410, 7
    %v412 = vsub.s32 %v409, %v411
    %v413 = vrot.slane %v397, %v412
    %v415 = vunpack.c.l.s4 1966171168
    %v416 = vunpack.c.0.s8 %v415
    %v417 = vlaneseq
    %v418 = vshrl.u32 %v417, 7
    %v419 = vsub.s32 %v416, %v418
    %v420 = vrot.slane %v404, %v419
    %v422 = vunpack.c.l.s4 1966171168
    %v423 = vunpack.c.0.s8 %v422
    %v424 = vlaneseq
    %v425 = vshrl.u32 %v424, 7
    %v426 = vsub.s32 %v423, %v425
    %v427 = vrot.slane %v405, %v426
    %v429 = vunpack.c.l.s4 1966171168
    %v430 = vunpack.c.0.s8 %v429
    %v431 = vlaneseq
    %v432 = vshrl.u32 %v431, 7
    %v433 = vsub.s32 %v430, %v432
    %v434 = vrot.slane %v406, %v433
    %v435 = vcombine.high %v413, %v413
    %v436 = vcombine.high %v420, %v420
    %v437 = vcombine.high %v427, %v427
    %v438 = vcombine.high %v434, %v434
    %v439 = vlaneseq
    %v440 = vshrl.u32 %v439, 7
    %v441 = vsub.s32 0, %v440
    %v442 = vrot.slane %v413, %v441
    %v443 = vlaneseq
    %v444 = vshrl.u32 %v443, 7
    %v445 = vsub.s32 0, %v444
    %v446 = vrot.slane %v427, %v445
    %v447 = vlaneseq
    %v448 = vshrl.u32 %v447, 7
    %v449 = vsub.s32 0, %v448
    %v450 = vrot.slane %v435, %v449
    %v451 = vlaneseq
    %v452 = vshrl.u32 %v451, 7
    %v453 = vsub.s32 0, %v452
    %v454 = vrot.slane %v437, %v453
    %v455 = vlaneseq
    %v456 = vshrl.u32 %v455, 7
    %v457 = vsub.s32 0, %v456
    %v458 = vrot.slane %v420, %v457
    %v459 = vlaneseq
    %v460 = vshrl.u32 %v459, 7
    %v461 = vsub.s32 0, %v460
    %v462 = vrot.slane %v434, %v461
    %v463 = vlaneseq
    %v464 = vshrl.u32 %v463, 7
    %v465 = vsub.s32 0, %v464
    %v466 = vrot.slane %v436, %v465
    %v467 = vlaneseq
    %v468 = vshrl.u32 %v467, 7
    %v469 = vsub.s32 0, %v468
    %v470 = vrot.slane %v438, %v469
    %v479 = vsub.f32 %v442, %v132
    %v480 = vsub.f32 %v446, %v132
    %v481 = vsub.f32 %v450, %v132
    %v482 = vsub.f32 %v454, %v132
    %v483 = vsub.f32 %v458, %v132
    %v484 = vsub.f32 %v462, %v132
    %v485 = vsub.f32 %v466, %v132
    %v486 = vsub.f32 %v470, %v132
    %v487 = vand.u32 2147483647, %v479
    %v488 = vand.u32 2147483647, %v480
    %v489 = vand.u32 2147483647, %v481
    %v490 = vand.u32 2147483647, %v482
    %v491 = vand.u32 2147483647, %v483
    %v492 = vand.u32 2147483647, %v484
    %v493 = vand.u32 2147483647, %v485
    %v494 = vand.u32 2147483647, %v486
    %v495 = vsub.f32 %v381, %v487
    %v496 = vsub.f32 %v382, %v488
    %v497 = vsub.f32 %v383, %v489
    %v498 = vsub.f32 %v384, %v490
    %v499 = vsub.f32 %v385, %v491
    %v500 = vsub.f32 %v386, %v492
    %v501 = vsub.f32 %v387, %v493
    %v502 = vsub.f32 %v388, %v494
    %v504 = vcombine.high %v201, %v201
    %v506 = vunpack.c.l.s4 1966171168
    %v507 = vunpack.c.0.s8 %v506
    %v508 = vlaneseq
    %v509 = vshrl.u32 %v508, 7
    %v510 = vsub.s32 %v507, %v509
    %v511 = vrot.slane %v201, %v510
    %v513 = vunpack.c.l.s4 1966171168
    %v514 = vunpack.c.0.s8 %v513
    %v515 = vlaneseq
    %v516 = vshrl.u32 %v515, 7
    %v517 = vsub.s32 %v514, %v516
    %v518 = vrot.slane %v504, %v517
    %v519 = vcombine.high %v511, %v511
    %v520 = vcombine.high %v518, %v518
    %v522 = vunpack.c.l.s4 1966171168
    %v523 = vunpack.c.0.s8 %v522
    %v524 = vlaneseq
    %v525 = vshrl.u32 %v524, 7
    %v526 = vsub.s32 %v523, %v525
    %v527 = vrot.slane %v511, %v526
    %v529 = vunpack.c.l.s4 1966171168
    %v530 = vunpack.c.0.s8 %v529
    %v531 = vlaneseq
    %v532 = vshrl.u32 %v531, 7
    %v533 = vsub.s32 %v530, %v532
    %v534 = vrot.slane %v518, %v533
    %v536 = vunpack.c.l.s4 1966171168
    %v537 = vunpack.c.0.s8 %v536
    %v538 = vlaneseq
    %v539 = vshrl.u32 %v538, 7
    %v540 = vsub.s32 %v537, %v539
    %v541 = vrot.slane %v519, %v540
    %v543 = vunpack.c.l.s4 1966171168
    %v544 = vunpack.c.0.s8 %v543
    %v545 = vlaneseq
    %v546 = vshrl.u32 %v545, 7
    %v547 = vsub.s32 %v544, %v546
    %v548 = vrot.slane %v520, %v547
    %v549 = vcombine.high %v527, %v527
    %v550 = vcombine.high %v534, %v534
    %v551 = vcombine.high %v541, %v541
    %v552 = vcombine.high %v548, %v548
    %v553 = vlaneseq
    %v554 = vshrl.u32 %v553, 7
    %v555 = vsub.s32 0, %v554
    %v556 = vrot.slane %v527, %v555
    %v557 = vlaneseq
    %v558 = vshrl.u32 %v557, 7
    %v559 = vsub.s32 0, %v558
    %v560 = vrot.slane %v541, %v559
    %v561 = vlaneseq
    %v562 = vshrl.u32 %v561, 7
    %v563 = vsub.s32 0, %v562
    %v564 = vrot.slane %v549, %v563
    %v565 = vlaneseq
    %v566 = vshrl.u32 %v565, 7
    %v567 = vsub.s32 0, %v566
    %v568 = vrot.slane %v551, %v567
    %v569 = vlaneseq
    %v570 = vshrl.u32 %v569, 7
    %v571 = vsub.s32 0, %v570
    %v572 = vrot.slane %v534, %v571
    %v573 = vlaneseq
    %v574 = vshrl.u32 %v573, 7
    %v575 = vsub.s32 0, %v574
    %v576 = vrot.slane %v548, %v575
    %v577 = vlaneseq
    %v578 = vshrl.u32 %v577, 7
    %v579 = vsub.s32 0, %v578
    %v580 = vrot.slane %v550, %v579
    %v581 = vlaneseq
    %v582 = vshrl.u32 %v581, 7
    %v583 = vsub.s32 0, %v582
    %v584 = vrot.slane %v552, %v583
    %v593 = vsub.f32 %v556, %v201
    %v594 = vsub.f32 %v560, %v201
    %v595 = vsub.f32 %v564, %v201
    %v596 = vsub.f32 %v568, %v201
    %v597 = vsub.f32 %v572, %v201
    %v598 = vsub.f32 %v576, %v201
    %v599 = vsub.f32 %v580, %v201
    %v600 = vsub.f32 %v584, %v201
    %v601 = vand.u32 2147483647, %v593
    %v602 = vand.u32 2147483647, %v594
    %v603 = vand.u32 2147483647, %v595
    %v604 = vand.u32 2147483647, %v596
    %v605 = vand.u32 2147483647, %v597
    %v606 = vand.u32 2147483647, %v598
    %v607 = vand.u32 2147483647, %v599
    %v608 = vand.u32 2147483647, %v600
    %v609 = vsub.f32 %v495, %v601
    %v610 = vsub.f32 %v496, %v602
    %v611 = vsub.f32 %v497, %v603
    %v612 = vsub.f32 %v498, %v604
    %v613 = vsub.f32 %v499, %v605
    %v614 = vsub.f32 %v500, %v606
    %v615 = vsub.f32 %v501, %v607
    %v616 = vsub.f32 %v502, %v608
    %v618 = vcombine.high %v203, %v203
    %v620 = vunpack.c.l.s4 1966171168
    %v621 = vunpack.c.0.s8 %v620
    %v622 = vlaneseq
    %v623 = vshrl.u32 %v622, 7
    %v624 = vsub.s32 %v621, %v623
    %v625 = vrot.slane %v203, %v624
    %v627 = vunpack.c.l.s4 1966171168
    %v628 = vunpack.c.0.s8 %v627
    %v629 = vlaneseq
    %v630 = vshrl.u32 %v629, 7
    %v631 = vsub.s32 %v628, %v630
    %v632 = vrot.slane %v618, %v631
    %v633 = vcombine.high %v625, %v625
    %v634 = vcombine.high %v632, %v632
    %v636 = vunpack.c.l.s4 1966171168
    %v637 = vunpack.c.0.s8 %v636
    %v638 = vlaneseq
    %v639 = vshrl.u32 %v638, 7
    %v640 = vsub.s32 %v637, %v639
    %v641 = vrot.slane %v625, %v640
    %v643 = vunpack.c.l.s4 1966171168
    %v644 = vunpack.c.0.s8 %v643
    %v645 = vlaneseq
    %v646 = vshrl.u32 %v645, 7
    %v647 = vsub.s32 %v644, %v646
    %v648 = vrot.slane %v632, %v647
    %v650 = vunpack.c.l.s4 1966171168
    %v651 = vunpack.c.0.s8 %v650
    %v652 = vlaneseq
    %v653 = vshrl.u32 %v652, 7
    %v654 = vsub.s32 %v651, %v653
    %v655 = vrot.slane %v633, %v654
    %v657 = vunpack.c.l.s4 1966171168
    %v658 = vunpack.c.0.s8 %v657
    %v659 = vlaneseq
    %v660 = vshrl.u32 %v659, 7
    %v661 = vsub.s32 %v658, %v660
    %v662 = vrot.slane %v634, %v661
    %v663 = vcombine.high %v641, %v641
    %v664 = vcombine.high %v648, %v648
    %v665 = vcombine.high %v655, %v655
    %v666 = vcombine.high %v662, %v662
    %v667 = vlaneseq
    %v668 = vshrl.u32 %v667, 7
    %v669 = vsub.s32 0, %v668
    %v670 = vrot.slane %v641, %v669
    %v671 = vlaneseq
    %v672 = vshrl.u32 %v671, 7
    %v673 = vsub.s32 0, %v672
    %v674 = vrot.slane %v655, %v673
    %v675 = vlaneseq
    %v676 = vshrl.u32 %v675, 7
    %v677 = vsub.s32 0, %v676
    %v678 = vrot.slane %v663, %v677
    %v679 = vlaneseq
    %v680 = vshrl.u32 %v679, 7
    %v681 = vsub.s32 0, %v680
    %v682 = vrot.slane %v665, %v681
    %v683 = vlaneseq
    %v684 = vshrl.u32 %v683, 7
    %v685 = vsub.s32 0, %v684
    %v686 = vrot.slane %v648, %v685
    %v687 = vlaneseq
    %v688 = vshrl.u32 %v687, 7
    %v689 = vsub.s32 0, %v688
    %v690 = vrot.slane %v662, %v689
    %v691 = vlaneseq
    %v692 = vshrl.u32 %v691, 7
    %v693 = vsub.s32 0, %v692
    %v694 = vrot.slane %v664, %v693
    %v695 = vlaneseq
    %v696 = vshrl.u32 %v695, 7
    %v697 = vsub.s32 0, %v696
    %v698 = vrot.slane %v666, %v697
    %v707 = vsub.f32 %v670, %v203
    %v708 = vsub.f32 %v674, %v203
    %v709 = vsub.f32 %v678, %v203
    %v710 = vsub.f32 %v682, %v203
    %v711 = vsub.f32 %v686, %v203
    %v712 = vsub.f32 %v690, %v203
    %v713 = vsub.f32 %v694, %v203
    %v714 = vsub.f32 %v698, %v203
    %v715 = vand.u32 2147483647, %v707
    %v716 = vand.u32 2147483647, %v708
    %v717 = vand.u32 2147483647, %v709
    %v718 = vand.u32 2147483647, %v710
    %v719 = vand.u32 2147483647, %v711
    %v720 = vand.u32 2147483647, %v712
    %v721 = vand.u32 2147483647, %v713
    %v722 = vand.u32 2147483647, %v714
    %v723 = vsub.f32 %v609, %v715
    %v724 = vsub.f32 %v610, %v716
    %v725 = vsub.f32 %v611, %v717
    %v726 = vsub.f32 %v612, %v718
    %v727 = vsub.f32 %v613, %v719
    %v728 = vsub.f32 %v614, %v720
    %v729 = vsub.f32 %v615, %v721
    %v730 = vsub.f32 %v616, %v722
    %v732 = vcombine.high %v272, %v272
    %v734 = vunpack.c.l.s4 1966171168
    %v735 = vunpack.c.0.s8 %v734
    %v736 = vlaneseq
    %v737 = vshrl.u32 %v736, 7
    %v738 = vsub.s32 %v735, %v737
    %v739 = vrot.slane %v272, %v738
    %v741 = vunpack.c.l.s4 1966171168
    %v742 = vunpack.c.0.s8 %v741
    %v743 = vlaneseq
    %v744 = vshrl.u32 %v743, 7
    %v745 = vsub.s32 %v742, %v744
    %v746 = vrot.slane %v732, %v745
    %v747 = vcombine.high %v739, %v739
    %v748 = vcombine.high %v746, %v746
    %v750 = vunpack.c.l.s4 1966171168
    %v751 = vunpack.c.0.s8 %v750
    %v752 = vlaneseq
    %v753 = vshrl.u32 %v752, 7
    %v754 = vsub.s32 %v751, %v753
    %v755 = vrot.slane %v739, %v754
    %v757 = vunpack.c.l.s4 1966171168
    %v758 = vunpack.c.0.s8 %v757
    %v759 = vlaneseq
    %v760 = vshrl.u32 %v759, 7
    %v761 = vsub.s32 %v758, %v760
    %v762 = vrot.slane %v746, %v761
    %v764 = vunpack.c.l.s4 1966171168
    %v765 = vunpack.c.0.s8 %v764
    %v766 = vlaneseq
    %v767 = vshrl.u32 %v766, 7
    %v768 = vsub.s32 %v765, %v767
    %v769 = vrot.slane %v747, %v768
    %v771 = vunpack.c.l.s4 1966171168
    %v772 = vunpack.c.0.s8 %v771
    %v773 = vlaneseq
    %v774 = vshrl.u32 %v773, 7
    %v775 = vsub.s32 %v772, %v774
    %v776 = vrot.slane %v748, %v775
    %v777 = vcombine.high %v755, %v755
    %v778 = vcombine.high %v762, %v762
    %v779 = vcombine.high %v769, %v769
    %v780 = vcombine.high %v776, %v776
    %v781 = vlaneseq
    %v782 = vshrl.u32 %v781, 7
    %v783 = vsub.s32 0, %v782
    %v784 = vrot.slane %v755, %v783
    %v785 = vlaneseq
    %v786 = vshrl.u32 %v785, 7
    %v787 = vsub.s32 0, %v786
    %v788 = vrot.slane %v769, %v787
    %v789 = vlaneseq
    %v790 = vshrl.u32 %v789, 7
    %v791 = vsub.s32 0, %v790
    %v792 = vrot.slane %v777, %v791
    %v793 = vlaneseq
    %v794 = vshrl.u32 %v793, 7
    %v795 = vsub.s32 0, %v794
    %v796 = vrot.slane %v779, %v795
    %v797 = vlaneseq
    %v798 = vshrl.u32 %v797, 7
    %v799 = vsub.s32 0, %v798
    %v800 = vrot.slane %v762, %v799
    %v801 = vlaneseq
    %v802 = vshrl.u32 %v801, 7
    %v803 = vsub.s32 0, %v802
    %v804 = vrot.slane %v776, %v803
    %v805 = vlaneseq
    %v806 = vshrl.u32 %v805, 7
    %v807 = vsub.s32 0, %v806
    %v808 = vrot.slane %v778, %v807
    %v809 = vlaneseq
    %v810 = vshrl.u32 %v809, 7
    %v811 = vsub.s32 0, %v810
    %v812 = vrot.slane %v780, %v811
    %v821 = vsub.f32 %v784, %v272
    %v822 = vsub.f32 %v788, %v272
    %v823 = vsub.f32 %v792, %v272
    %v824 = vsub.f32 %v796, %v272
    %v825 = vsub.f32 %v800, %v272
    %v826 = vsub.f32 %v804, %v272
    %v827 = vsub.f32 %v808, %v272
    %v828 = vsub.f32 %v812, %v272
    %v829 = vand.u32 2147483647, %v821
    %v830 = vand.u32 2147483647, %v822
    %v831 = vand.u32 2147483647, %v823
    %v832 = vand.u32 2147483647, %v824
    %v833 = vand.u32 2147483647, %v825
    %v834 = vand.u32 2147483647, %v826
    %v835 = vand.u32 2147483647, %v827
    %v836 = vand.u32 2147483647, %v828
    %v837 = vsub.f32 %v723, %v829
    %v838 = vsub.f32 %v724, %v830
    %v839 = vsub.f32 %v725, %v831
    %v840 = vsub.f32 %v726, %v832
    %v841 = vsub.f32 %v727, %v833
    %v842 = vsub.f32 %v728, %v834
    %v843 = vsub.f32 %v729, %v835
    %v844 = vsub.f32 %v730, %v836
    %v845 = vmul.f32 %v837, 1.442695
    %v846 = vpow.pop %v845
    %v847 = vmul.f32 %v838, 1.442695
    %v848 = vpow.pop %v847
    %v849 = vmul.f32 %v839, 1.442695
    %v850 = vpow.pop %v849
    %v851 = vmul.f32 %v840, 1.442695
    %v852 = vpow.pop %v851
    %v853 = vmul.f32 %v841, 1.442695
    %v854 = vpow.pop %v853
    %v855 = vmul.f32 %v842, 1.442695
    %v856 = vpow.pop %v855
    %v857 = vmul.f32 %v843, 1.442695
    %v858 = vpow.pop %v857
    %v859 = vmul.f32 %v844, 1.442695
    %v860 = vpow.pop %v859
    %v861 = vrot.slane %v846, 4
    %v862 = vadd.f32 %v846, %v861
    %v863 = vrot.slane %v862, 2
    %v864 = vadd.f32 %v862, %v863
    %v865 = vrot.slane %v864, 1
    %v866 = vadd.f32 %v864, %v865
    %v867 = vrot.slane %v848, 4
    %v868 = vadd.f32 %v848, %v867
    %v869 = vrot.slane %v868, 2
    %v870 = vadd.f32 %v868, %v869
    %v871 = vrot.slane %v870, 1
    %v872 = vadd.f32 %v870, %v871
    %v873 = vrot.slane %v850, 4
    %v874 = vadd.f32 %v850, %v873
    %v875 = vrot.slane %v874, 2
    %v876 = vadd.f32 %v874, %v875
    %v877 = vrot.slane %v876, 1
    %v878 = vadd.f32 %v876, %v877
    %v879 = vrot.slane %v852, 4
    %v880 = vadd.f32 %v852, %v879
    %v881 = vrot.slane %v880, 2
    %v882 = vadd.f32 %v880, %v881
    %v883 = vrot.slane %v882, 1
    %v884 = vadd.f32 %v882, %v883
    %v885 = vrot.slane %v854, 4
    %v886 = vadd.f32 %v854, %v885
    %v887 = vrot.slane %v886, 2
    %v888 = vadd.f32 %v886, %v887
    %v889 = vrot.slane %v888, 1
    %v890 = vadd.f32 %v888, %v889
    %v891 = vrot.slane %v856, 4
    %v892 = vadd.f32 %v856, %v891
    %v893 = vrot.slane %v892, 2
    %v894 = vadd.f32 %v892, %v893
    %v895 = vrot.slane %v894, 1
    %v896 = vadd.f32 %v894, %v895
    %v897 = vrot.slane %v858, 4
    %v898 = vadd.f32 %v858, %v897
    %v899 = vrot.slane %v898, 2
    %v900 = vadd.f32 %v898, %v899
    %v901 = vrot.slane %v900, 1
    %v902 = vadd.f32 %v900, %v901
    %v903 = vrot.slane %v860, 4
    %v904 = vadd.f32 %v860, %v903
    %v905 = vrot.slane %v904, 2
    %v906 = vadd.f32 %v904, %v905
    %v907 = vrot.slane %v906, 1
    %v908 = vadd.f32 %v906, %v907
    %vm917 = vcmask 1041409
    %v918 = vsel %vm917, %v872, %v866
    %vm919 = vcmask 1042434
    %v920 = vsel %vm919, %v878, %v918
    %vm921 = vcmask 1043459
    %v922 = vsel %vm921, %v884, %v920
    %vm923 = vcmask 1044484
    %v924 = vsel %vm923, %v890, %v922
    %vm925 = vcmask 1045509
    %v926 = vsel %vm925, %v896, %v924
    %vm927 = vcmask 1046534
    %v928 = vsel %vm927, %v902, %v926
    %vm929 = vcmask 1047559
    %v930 = vsel %vm929, %v908, %v928
    %932 = vst [vmem:[#allocation7] sm:$0xff] %v930
    // Predicated region
    $region18: #{tpu_custom_call.1} parent=1 // pred_check
      _
    $region19: #{tpu_custom_call.1} parent=1 // pred_check_branch
      %934 = sbr.rel (0) target = $region21
    $region20: #{tpu_custom_call.1} parent=1 // pred_region
      %s936 = ssub.s32 128, 128
      %937 = vsyncadd [#allocation4], %s936
      %s939 = sshll.u32 [#allocation7], 4
      %s940 = int_to_ptr.vmem [resolvable:$true] %s939
      %942 = dma.vmem_to_hbm [thread:$0]  %s940, 128, %s2, [#allocation4]
    $region21: #{tpu_custom_call.1} parent=1 // pred_fallthru
      _
    // Predicated region
    $region22: #{tpu_custom_call.1} parent=1 // pred_check
      _
    $region23: #{tpu_custom_call.1} parent=1 // pred_check_branch
      %944 = sbr.rel (0) target = $region25
    $region24: #{tpu_custom_call.1} parent=1 // pred_region
      %945 = dma.done [#allocation4], 128
    $region25: #{tpu_custom_call.1} parent=1 // pred_fallthru
      _
    %946 = vsyncpa [#allocation3], 1
    %947 = vsyncpa [#allocation6], 1
    %948 = vsyncpa [#allocation4], 1

</llo_original>
